<compile_context>
chip_gen: v5e
topology: v5e:2x2
jax: 0.10.0
libtpu: 0.0.40
codegen_flags: <defaults>
</compile_context>

<pallas_src>
import jax
import jax.numpy as jnp
from jax import lax
from jax.experimental import pallas as pl
from jax.experimental.pallas import tpu as pltpu

IN_F = 5       # model input features
H1 = 5         # sub1.fc  out
H2 = 8         # sub2.fc1 out
H3 = 5         # sub2.fc2 out
OUT_F = 5      # fc3 out
PAD = 128      # lane-dense feature padding
MAX_TB = 512   # max batch-tile rows (sized for v7x 32 MiB scoped VMEM)

# Contract x dim 1 against weight dim 1 (weight kept in PyTorch (OUT, IN) layout).
_DN = (((1,), (1,)), ((), ()))


def _round_up(n, m):
    return ((n + m - 1) // m) * m


def _nested_kernel(x_ref,
                   w1_ref, b1_ref,
                   w2_ref, b2_ref,
                   w3_ref, b3_ref,
                   w4_ref, b4_ref,
                   o_ref):
    x = x_ref[...]                                                    # (TB, 128)

    # sub1: Linear(5,5) + ReLU
    h = lax.dot_general(x, w1_ref[...], _DN,
                        preferred_element_type=jnp.float32) + b1_ref[...]
    h = jnp.maximum(h, 0.0)

    # sub2.fc1: Linear(5,8)
    h = lax.dot_general(h, w2_ref[...], _DN,
                        preferred_element_type=jnp.float32) + b2_ref[...]

    # sub2.fc2: Linear(8,5)
    h = lax.dot_general(h, w3_ref[...], _DN,
                        preferred_element_type=jnp.float32) + b3_ref[...]

    # fc3: Linear(5,5)
    h = lax.dot_general(h, w4_ref[...], _DN,
                        preferred_element_type=jnp.float32) + b4_ref[...]

    o_ref[...] = h.astype(o_ref.dtype)


def _pad2(a, rows, cols):
    """Zero-pad a 2-D array up to (rows, cols)."""
    out = jnp.zeros((rows, cols), a.dtype)
    return out.at[: a.shape[0], : a.shape[1]].set(a)


def nested_model_forward(x, params):
    """x: (B, 5) f32.  params: dict of PyTorch-layout (OUT, IN) weights and (OUT,) biases."""
    B = x.shape[0]

    # Batch tiling: one tile if small, otherwise MAX_TB-row tiles.
    if B <= MAX_TB:
        tb = max(_round_up(B, 8), 8)
        b_pad = tb
    else:
        tb = MAX_TB
        b_pad = _round_up(B, tb)

    # Lane-dense padding of activations, weights, biases to 128 features.
    x_p = _pad2(x, b_pad, PAD)
    w1 = _pad2(params["w1"], PAD, PAD)
    w2 = _pad2(params["w2"], PAD, PAD)
    w3 = _pad2(params["w3"], PAD, PAD)
    w4 = _pad2(params["w4"], PAD, PAD)
    b1 = _pad2(params["b1"].reshape(1, -1), 1, PAD)
    b2 = _pad2(params["b2"].reshape(1, -1), 1, PAD)
    b3 = _pad2(params["b3"].reshape(1, -1), 1, PAD)
    b4 = _pad2(params["b4"].reshape(1, -1), 1, PAD)

    grid = (b_pad // tb,)

    x_spec = pl.BlockSpec((tb, PAD), lambda i: (i, 0))
    w_spec = pl.BlockSpec((PAD, PAD), lambda i: (0, 0))   # VMEM-resident across grid
    b_spec = pl.BlockSpec((1, PAD), lambda i: (0, 0))
    o_spec = pl.BlockSpec((tb, PAD), lambda i: (i, 0))

    y_pad = pl.pallas_call(
        _nested_kernel,
        out_shape=jax.ShapeDtypeStruct((b_pad, PAD), jnp.float32),
        grid=grid,
        in_specs=[x_spec,
                  w_spec, b_spec,
                  w_spec, b_spec,
                  w_spec, b_spec,
                  w_spec, b_spec],
        out_specs=o_spec,
        compiler_params=pltpu.CompilerParams(
            dimension_semantics=("parallel",)),
    )(x_p, w1, b1, w2, b2, w3, b3, w4, b4)

    return y_pad[:B, :OUT_F]


def _reference(x, p):
    h = x @ p["w1"].T + p["b1"]
    h = jnp.maximum(h, 0.0)
    h = h @ p["w2"].T + p["b2"]
    h = h @ p["w3"].T + p["b3"]
    h = h @ p["w4"].T + p["b4"]
    return h


def _init_linear(key, out_f, in_f):
    kw, kb = jax.random.split(key)
    bound = 1.0 / (in_f ** 0.5)
    w = jax.random.uniform(kw, (out_f, in_f), jnp.float32, -bound, bound)
    b = jax.random.uniform(kb, (out_f,), jnp.float32, -bound, bound)
    return w, b


if __name__ == "__main__":
    key = jax.random.PRNGKey(0)
    k_x, k1, k2, k3, k4 = jax.random.split(key, 5)

    w1, b1 = _init_linear(k1, H1, IN_F)    # sub1.fc   (5,5)
    w2, b2 = _init_linear(k2, H2, H1)      # sub2.fc1  (8,5)
    w3, b3 = _init_linear(k3, H3, H2)      # sub2.fc2  (5,8)
    w4, b4 = _init_linear(k4, OUT_F, H3)   # fc3       (5,5)
    params = {"w1": w1, "b1": b1, "w2": w2, "b2": b2,
              "w3": w3, "b3": b3, "w4": w4, "b4": b4}

    # Small input consistent with the module: (batch, 5)
    x = jax.random.normal(k_x, (8, IN_F), jnp.float32)

    y = nested_model_forward(x, params)
    y = jax.block_until_ready(y)

    y_ref = _reference(x, params)
    assert y.shape == (8, OUT_F)
    assert jnp.allclose(y, y_ref, atol=1e-5, rtol=1e-5), "mismatch vs reference"

    print("KERNEL_OK")
</pallas_src>

<mosaic_0001>
module attributes {stable_mosaic.version = 11 : i64} {
  func.func @_nested_kernel(%arg0: i32, %arg1: memref<8x128xf32, #tpu.memory_space<vmem>>, %arg2: memref<128x128xf32, #tpu.memory_space<vmem>>, %arg3: memref<1x128xf32, #tpu.memory_space<vmem>>, %arg4: memref<128x128xf32, #tpu.memory_space<vmem>>, %arg5: memref<1x128xf32, #tpu.memory_space<vmem>>, %arg6: memref<128x128xf32, #tpu.memory_space<vmem>>, %arg7: memref<1x128xf32, #tpu.memory_space<vmem>>, %arg8: memref<128x128xf32, #tpu.memory_space<vmem>>, %arg9: memref<1x128xf32, #tpu.memory_space<vmem>>, %arg10: memref<8x128xf32, #tpu.memory_space<vmem>>) attributes {dimension_semantics = [#tpu.dimension_semantics<parallel>], iteration_bounds = array<i64: 1>, scalar_prefetch = 0 : i64, scratch_operands = 0 : i64, tpu.core_type = #tpu.core_type<tc>, window_params = [{transform_indices = @transform_0, window_bounds = array<i64: 8, 128>}, {pipeline_mode = #tpu.pipeline_mode<synchronous>, transform_indices = @transform_1, window_bounds = array<i64: 128, 128>}, {pipeline_mode = #tpu.pipeline_mode<synchronous>, transform_indices = @transform_2, window_bounds = array<i64: 1, 128>}, {pipeline_mode = #tpu.pipeline_mode<synchronous>, transform_indices = @transform_3, window_bounds = array<i64: 128, 128>}, {pipeline_mode = #tpu.pipeline_mode<synchronous>, transform_indices = @transform_4, window_bounds = array<i64: 1, 128>}, {pipeline_mode = #tpu.pipeline_mode<synchronous>, transform_indices = @transform_5, window_bounds = array<i64: 128, 128>}, {pipeline_mode = #tpu.pipeline_mode<synchronous>, transform_indices = @transform_6, window_bounds = array<i64: 1, 128>}, {pipeline_mode = #tpu.pipeline_mode<synchronous>, transform_indices = @transform_7, window_bounds = array<i64: 128, 128>}, {pipeline_mode = #tpu.pipeline_mode<synchronous>, transform_indices = @transform_8, window_bounds = array<i64: 1, 128>}, {transform_indices = @transform_9, window_bounds = array<i64: 8, 128>}]} {
    %c0 = arith.constant 0 : index
    %c0_0 = arith.constant 0 : index
    %0 = vector.load %arg1[%c0, %c0_0] : memref<8x128xf32, #tpu.memory_space<vmem>>, vector<8x128xf32>
    %c0_1 = arith.constant 0 : index
    %c0_2 = arith.constant 0 : index
    %1 = vector.load %arg2[%c0_1, %c0_2] : memref<128x128xf32, #tpu.memory_space<vmem>>, vector<128x128xf32>
    %cst = arith.constant dense<0.000000e+00> : vector<8x128xf32>
    %2 = tpu.matmul %0, %1, %cst {dimension_numbers = #tpu.dot_dimension_numbers<[1], [1], [0], [0], [0, 0, 1, 0], [], []>} : vector<8x128xf32>, vector<128x128xf32>, vector<8x128xf32> -> vector<8x128xf32>
    %c0_3 = arith.constant 0 : index
    %c0_4 = arith.constant 0 : index
    %3 = vector.load %arg3[%c0_3, %c0_4] : memref<1x128xf32, #tpu.memory_space<vmem>>, vector<1x128xf32>
    %4 = vector.broadcast %3 : vector<1x128xf32> to vector<8x128xf32>
    %5 = arith.addf %2, %4 : vector<8x128xf32>
    %cst_5 = arith.constant 0.000000e+00 : f32
    %6 = vector.broadcast %cst_5 : f32 to vector<8x128xf32>
    %7 = arith.maximumf %5, %6 : vector<8x128xf32>
    %c0_6 = arith.constant 0 : index
    %c0_7 = arith.constant 0 : index
    %8 = vector.load %arg4[%c0_6, %c0_7] : memref<128x128xf32, #tpu.memory_space<vmem>>, vector<128x128xf32>
    %cst_8 = arith.constant dense<0.000000e+00> : vector<8x128xf32>
    %9 = tpu.matmul %7, %8, %cst_8 {dimension_numbers = #tpu.dot_dimension_numbers<[1], [1], [0], [0], [0, 0, 1, 0], [], []>} : vector<8x128xf32>, vector<128x128xf32>, vector<8x128xf32> -> vector<8x128xf32>
    %c0_9 = arith.constant 0 : index
    %c0_10 = arith.constant 0 : index
    %10 = vector.load %arg5[%c0_9, %c0_10] : memref<1x128xf32, #tpu.memory_space<vmem>>, vector<1x128xf32>
    %11 = vector.broadcast %10 : vector<1x128xf32> to vector<8x128xf32>
    %12 = arith.addf %9, %11 : vector<8x128xf32>
    %c0_11 = arith.constant 0 : index
    %c0_12 = arith.constant 0 : index
    %13 = vector.load %arg6[%c0_11, %c0_12] : memref<128x128xf32, #tpu.memory_space<vmem>>, vector<128x128xf32>
    %cst_13 = arith.constant dense<0.000000e+00> : vector<8x128xf32>
    %14 = tpu.matmul %12, %13, %cst_13 {dimension_numbers = #tpu.dot_dimension_numbers<[1], [1], [0], [0], [0, 0, 1, 0], [], []>} : vector<8x128xf32>, vector<128x128xf32>, vector<8x128xf32> -> vector<8x128xf32>
    %c0_14 = arith.constant 0 : index
    %c0_15 = arith.constant 0 : index
    %15 = vector.load %arg7[%c0_14, %c0_15] : memref<1x128xf32, #tpu.memory_space<vmem>>, vector<1x128xf32>
    %16 = vector.broadcast %15 : vector<1x128xf32> to vector<8x128xf32>
    %17 = arith.addf %14, %16 : vector<8x128xf32>
    %c0_16 = arith.constant 0 : index
    %c0_17 = arith.constant 0 : index
    %18 = vector.load %arg8[%c0_16, %c0_17] : memref<128x128xf32, #tpu.memory_space<vmem>>, vector<128x128xf32>
    %cst_18 = arith.constant dense<0.000000e+00> : vector<8x128xf32>
    %19 = tpu.matmul %17, %18, %cst_18 {dimension_numbers = #tpu.dot_dimension_numbers<[1], [1], [0], [0], [0, 0, 1, 0], [], []>} : vector<8x128xf32>, vector<128x128xf32>, vector<8x128xf32> -> vector<8x128xf32>
    %c0_19 = arith.constant 0 : index
    %c0_20 = arith.constant 0 : index
    %20 = vector.load %arg9[%c0_19, %c0_20] : memref<1x128xf32, #tpu.memory_space<vmem>>, vector<1x128xf32>
    %21 = vector.broadcast %20 : vector<1x128xf32> to vector<8x128xf32>
    %22 = arith.addf %19, %21 : vector<8x128xf32>
    %c0_21 = arith.constant 0 : index
    %c0_22 = arith.constant 0 : index
    %23 = vector.load %arg10[%c0_21, %c0_22] : memref<8x128xf32, #tpu.memory_space<vmem>>, vector<8x128xf32>
    tpu.vector_store %arg10[%c0_21, %c0_22], %22 {strides = array<i32>} : memref<8x128xf32, #tpu.memory_space<vmem>>, vector<8x128xf32>,
    return
  }
  func.func @transform_0(%arg0: i32) -> (i32, i32) {
    %c0_i32 = arith.constant 0 : i32
    %c0_i32_0 = arith.constant 0 : i32
    return %arg0, %c0_i32 : i32, i32
  }
  func.func @transform_1(%arg0: i32) -> (i32, i32) {
    %c0_i32 = arith.constant 0 : i32
    %c0_i32_0 = arith.constant 0 : i32
    %c0_i32_1 = arith.constant 0 : i32
    return %c0_i32, %c0_i32_0 : i32, i32
  }
  func.func @transform_2(%arg0: i32) -> (i32, i32) {
    %c0_i32 = arith.constant 0 : i32
    %c0_i32_0 = arith.constant 0 : i32
    %c0_i32_1 = arith.constant 0 : i32
    return %c0_i32, %c0_i32_0 : i32, i32
  }
  func.func @transform_3(%arg0: i32) -> (i32, i32) {
    %c0_i32 = arith.constant 0 : i32
    %c0_i32_0 = arith.constant 0 : i32
    %c0_i32_1 = arith.constant 0 : i32
    return %c0_i32, %c0_i32_0 : i32, i32
  }
  func.func @transform_4(%arg0: i32) -> (i32, i32) {
    %c0_i32 = arith.constant 0 : i32
    %c0_i32_0 = arith.constant 0 : i32
    %c0_i32_1 = arith.constant 0 : i32
    return %c0_i32, %c0_i32_0 : i32, i32
  }
  func.func @transform_5(%arg0: i32) -> (i32, i32) {
    %c0_i32 = arith.constant 0 : i32
    %c0_i32_0 = arith.constant 0 : i32
    %c0_i32_1 = arith.constant 0 : i32
    return %c0_i32, %c0_i32_0 : i32, i32
  }
  func.func @transform_6(%arg0: i32) -> (i32, i32) {
    %c0_i32 = arith.constant 0 : i32
    %c0_i32_0 = arith.constant 0 : i32
    %c0_i32_1 = arith.constant 0 : i32
    return %c0_i32, %c0_i32_0 : i32, i32
  }
  func.func @transform_7(%arg0: i32) -> (i32, i32) {
    %c0_i32 = arith.constant 0 : i32
    %c0_i32_0 = arith.constant 0 : i32
    %c0_i32_1 = arith.constant 0 : i32
    return %c0_i32, %c0_i32_0 : i32, i32
  }
  func.func @transform_8(%arg0: i32) -> (i32, i32) {
    %c0_i32 = arith.constant 0 : i32
    %c0_i32_0 = arith.constant 0 : i32
    %c0_i32_1 = arith.constant 0 : i32
    return %c0_i32, %c0_i32_0 : i32, i32
  }
  func.func @transform_9(%arg0: i32) -> (i32, i32) {
    %c0_i32 = arith.constant 0 : i32
    %c0_i32_0 = arith.constant 0 : i32
    return %arg0, %c0_i32 : i32, i32
  }
}

</mosaic_0001>

<llo_original>
// kernel: tpu_custom_call.1
$region0: #{tpu_custom_call.1}
  #allocation0 [shape = 'u32[]', space=smem, size = 0x4, offset = 0x4, fixed_abs, tag = 'smem constant byte address 0x4 - core index']
  #allocation1 [shape = 'u32[72,128]{1,0:T(1,128)}', space=vmem, size = 0x9000, scoped, tag = 'internal scratch']
  %s0 = inlined_call_operand.hbm [shape: f32[8,128], index: 0, kind: input, shape index: {}]
  %s1 = inlined_call_operand.hbm [shape: f32[128,128], index: 1, kind: input, shape index: {}]
  %s2 = inlined_call_operand.vmem [shape: f32[1,128], index: 2, kind: input, shape index: {}]
  %s3 = inlined_call_operand.hbm [shape: f32[128,128], index: 3, kind: input, shape index: {}]
  %s4 = inlined_call_operand.vmem [shape: f32[1,128], index: 4, kind: input, shape index: {}]
  %s5 = inlined_call_operand.hbm [shape: f32[128,128], index: 5, kind: input, shape index: {}]
  %s6 = inlined_call_operand.vmem [shape: f32[1,128], index: 6, kind: input, shape index: {}]
  %s7 = inlined_call_operand.hbm [shape: f32[128,128], index: 7, kind: input, shape index: {}]
  %s8 = inlined_call_operand.vmem [shape: f32[1,128], index: 8, kind: input, shape index: {}]
  %s9 = inlined_call_operand.hbm [shape: f32[8,128], index: 9, kind: output, shape index: {}]
  %s10 = sld [smem:[#allocation0]]
  $region66: #{tpu_custom_call.1} parent=0
    _
  %s12 = ssub.s32 1, %s10
  %s13 = scalar_select 0, %s12, %s10
  $region1: #{tpu_custom_call.1} parent=0
    #allocation2 [shape = 'u8[4096]{0}', space=vmem, size = 0x1000, scoped, tag = 'input window, operand 0, single buffered']
    #allocation3 [shape = 's32[1]{0}', space=sflag, size = 0x4, scoped, tag = 'scoped memory for tpu_custom_call.1']
    #allocation4 [shape = 's32[1]{0}', space=sflag, size = 0x4, scoped, tag = 'scoped memory for tpu_custom_call.1']
    #allocation5 [shape = 'u8[65536]{0}', space=vmem, size = 0x10000, scoped, tag = 'input window, operand 1, single buffered']
    #allocation6 [shape = 's32[1]{0}', space=sflag, size = 0x4, scoped, tag = 'scoped memory for tpu_custom_call.1']
    #allocation7 [shape = 'u8[65536]{0}', space=vmem, size = 0x10000, scoped, tag = 'input window, operand 3, single buffered']
    #allocation8 [shape = 'u8[65536]{0}', space=vmem, size = 0x10000, scoped, tag = 'input window, operand 5, single buffered']
    #allocation9 [shape = 's32[1]{0}', space=sflag, size = 0x4, scoped, tag = 'scoped memory for tpu_custom_call.1']
    #allocation10 [shape = 'u8[65536]{0}', space=vmem, size = 0x10000, scoped, tag = 'input window, operand 7, single buffered']
    #allocation11 [shape = 'u8[4096]{0}', space=vmem, size = 0x1000, scoped, tag = 'output window, operand 0, single buffered']
    %14 = vsyncpa [#allocation3], 0
    %15 = vsyncpa [#allocation6], 0
    %16 = vsyncpa [#allocation9], 0
    %17 = vsyncpa [#allocation4], 0
    // Predicated region
    $region2: #{tpu_custom_call.1} parent=1 // pred_check
      _
    $region3: #{tpu_custom_call.1} parent=1 // pred_check_branch
      %19 = sbr.rel (0) target = $region5
    $region4: #{tpu_custom_call.1} parent=1 // pred_region
      %21 = vsyncadd [#allocation3], 0
      %s23 = sshll.u32 %s0, 4
      %s24 = int_to_ptr.hbm [resolvable:$true] %s23
      %s25 = sshll.u32 [#allocation2], 4
      %s26 = int_to_ptr.vmem [resolvable:$true] %s25
      %28 = dma.hbm_to_vmem [thread:$0]  %s24, 128, %s26, [#allocation3]
    $region5: #{tpu_custom_call.1} parent=1 // pred_fallthru
      _
    // Predicated region
    $region6: #{tpu_custom_call.1} parent=1 // pred_check
      _
    $region7: #{tpu_custom_call.1} parent=1 // pred_check_branch
      %30 = sbr.rel (0) target = $region9
    $region8: #{tpu_custom_call.1} parent=1 // pred_region
      %32 = vsyncadd [#allocation6], 0
      %s33 = sshll.u32 %s1, 4
      %s34 = int_to_ptr.hbm [resolvable:$true] %s33
      %s35 = sshll.u32 [#allocation5], 4
      %s36 = int_to_ptr.vmem [resolvable:$true] %s35
      %41 = dma.hbm_to_vmem [thread:$0]  %s34, 2048, %s36, [#allocation6], 128, 128, 8
    $region9: #{tpu_custom_call.1} parent=1 // pred_fallthru
      _
    // Predicated region
    $region10: #{tpu_custom_call.1} parent=1 // pred_check
      _
    $region11: #{tpu_custom_call.1} parent=1 // pred_check_branch
      %43 = sbr.rel (0) target = $region13
    $region12: #{tpu_custom_call.1} parent=1 // pred_region
      _
    $region13: #{tpu_custom_call.1} parent=1 // pred_fallthru
      _
    // Predicated region
    $region14: #{tpu_custom_call.1} parent=1 // pred_check
      _
    $region15: #{tpu_custom_call.1} parent=1 // pred_check_branch
      %45 = sbr.rel (0) target = $region17
    $region16: #{tpu_custom_call.1} parent=1 // pred_region
      %47 = vsyncadd [#allocation6], 0
      %s48 = sshll.u32 %s3, 4
      %s49 = int_to_ptr.hbm [resolvable:$true] %s48
      %s50 = sshll.u32 [#allocation7], 4
      %s51 = int_to_ptr.vmem [resolvable:$true] %s50
      %56 = dma.hbm_to_vmem [thread:$0]  %s49, 2048, %s51, [#allocation6], 128, 128, 8
    $region17: #{tpu_custom_call.1} parent=1 // pred_fallthru
      _
    // Predicated region
    $region18: #{tpu_custom_call.1} parent=1 // pred_check
      _
    $region19: #{tpu_custom_call.1} parent=1 // pred_check_branch
      %58 = sbr.rel (0) target = $region21
    $region20: #{tpu_custom_call.1} parent=1 // pred_region
      _
    $region21: #{tpu_custom_call.1} parent=1 // pred_fallthru
      _
    // Predicated region
    $region22: #{tpu_custom_call.1} parent=1 // pred_check
      _
    $region23: #{tpu_custom_call.1} parent=1 // pred_check_branch
      %60 = sbr.rel (0) target = $region25
    $region24: #{tpu_custom_call.1} parent=1 // pred_region
      %62 = vsyncadd [#allocation9], 0
      %s63 = sshll.u32 %s5, 4
      %s64 = int_to_ptr.hbm [resolvable:$true] %s63
      %s65 = sshll.u32 [#allocation8], 4
      %s66 = int_to_ptr.vmem [resolvable:$true] %s65
      %71 = dma.hbm_to_vmem [thread:$0]  %s64, 2048, %s66, [#allocation9], 128, 128, 8
    $region25: #{tpu_custom_call.1} parent=1 // pred_fallthru
      _
    // Predicated region
    $region26: #{tpu_custom_call.1} parent=1 // pred_check
      _
    $region27: #{tpu_custom_call.1} parent=1 // pred_check_branch
      %73 = sbr.rel (0) target = $region29
    $region28: #{tpu_custom_call.1} parent=1 // pred_region
      _
    $region29: #{tpu_custom_call.1} parent=1 // pred_fallthru
      _
    // Predicated region
    $region30: #{tpu_custom_call.1} parent=1 // pred_check
      _
    $region31: #{tpu_custom_call.1} parent=1 // pred_check_branch
      %75 = sbr.rel (0) target = $region33
    $region32: #{tpu_custom_call.1} parent=1 // pred_region
      %77 = vsyncadd [#allocation9], 0
      %s78 = sshll.u32 %s7, 4
      %s79 = int_to_ptr.hbm [resolvable:$true] %s78
      %s80 = sshll.u32 [#allocation10], 4
      %s81 = int_to_ptr.vmem [resolvable:$true] %s80
      %86 = dma.hbm_to_vmem [thread:$0]  %s79, 2048, %s81, [#allocation9], 128, 128, 8
    $region33: #{tpu_custom_call.1} parent=1 // pred_fallthru
      _
    // Predicated region
    $region34: #{tpu_custom_call.1} parent=1 // pred_check
      _
    $region35: #{tpu_custom_call.1} parent=1 // pred_check_branch
      %88 = sbr.rel (0) target = $region37
    $region36: #{tpu_custom_call.1} parent=1 // pred_region
      _
    $region37: #{tpu_custom_call.1} parent=1 // pred_fallthru
      _
    // Predicated region
    $region38: #{tpu_custom_call.1} parent=1 // pred_check
      _
    $region39: #{tpu_custom_call.1} parent=1 // pred_check_branch
      %90 = sbr.rel (0) target = $region41
    $region40: #{tpu_custom_call.1} parent=1 // pred_region
      %92 = dma.done [#allocation3], 128
    $region41: #{tpu_custom_call.1} parent=1 // pred_fallthru
      _
    // Predicated region
    $region42: #{tpu_custom_call.1} parent=1 // pred_check
      _
    $region43: #{tpu_custom_call.1} parent=1 // pred_check_branch
      %94 = sbr.rel (0) target = $region45
    $region44: #{tpu_custom_call.1} parent=1 // pred_region
      %96 = dma.done [#allocation6], 2048
    $region45: #{tpu_custom_call.1} parent=1 // pred_fallthru
      _
    // Predicated region
    $region46: #{tpu_custom_call.1} parent=1 // pred_check
      _
    $region47: #{tpu_custom_call.1} parent=1 // pred_check_branch
      %98 = sbr.rel (0) target = $region49
    $region48: #{tpu_custom_call.1} parent=1 // pred_region
      %100 = dma.done [#allocation6], 2048
    $region49: #{tpu_custom_call.1} parent=1 // pred_fallthru
      _
    // Predicated region
    $region50: #{tpu_custom_call.1} parent=1 // pred_check
      _
    $region51: #{tpu_custom_call.1} parent=1 // pred_check_branch
      %102 = sbr.rel (0) target = $region53
    $region52: #{tpu_custom_call.1} parent=1 // pred_region
      %104 = dma.done [#allocation9], 2048
    $region53: #{tpu_custom_call.1} parent=1 // pred_fallthru
      _
    // Predicated region
    $region54: #{tpu_custom_call.1} parent=1 // pred_check
      _
    $region55: #{tpu_custom_call.1} parent=1 // pred_check_branch
      %106 = sbr.rel (0) target = $region57
    $region56: #{tpu_custom_call.1} parent=1 // pred_region
      %108 = dma.done [#allocation9], 2048
    $region57: #{tpu_custom_call.1} parent=1 // pred_fallthru
      _
    %v109 = vld [vmem:[#allocation2] sm:$0xff]
    %v110 = vld [vmem:[#allocation5] sm:$0xff]
    %v111 = vld [vmem:[#allocation5 + $0x8] sm:$0xff]
    %v112 = vld [vmem:[#allocation5 + $0x10] sm:$0xff]
    %v113 = vld [vmem:[#allocation5 + $0x18] sm:$0xff]
    %v114 = vld [vmem:[#allocation5 + $0x20] sm:$0xff]
    %v115 = vld [vmem:[#allocation5 + $0x28] sm:$0xff]
    %v116 = vld [vmem:[#allocation5 + $0x30] sm:$0xff]
    %v117 = vld [vmem:[#allocation5 + $0x38] sm:$0xff]
    %v118 = vld [vmem:[#allocation5 + $0x40] sm:$0xff]
    %v119 = vld [vmem:[#allocation5 + $0x48] sm:$0xff]
    %v120 = vld [vmem:[#allocation5 + $0x50] sm:$0xff]
    %v121 = vld [vmem:[#allocation5 + $0x58] sm:$0xff]
    %v122 = vld [vmem:[#allocation5 + $0x60] sm:$0xff]
    %v123 = vld [vmem:[#allocation5 + $0x68] sm:$0xff]
    %v124 = vld [vmem:[#allocation5 + $0x70] sm:$0xff]
    %v125 = vld [vmem:[#allocation5 + $0x78] sm:$0xff]
    %v126 = vld [vmem:[%s2] sm:$0x1]
    %v128 = vperm.slane %v126, 0
    %130 = vmatpush.xpose.msra.mxu0 %v125
    %131 = vmatpush.xpose.msra.mxu0 %v124
    %132 = vmatpush.xpose.msra.mxu0 %v123
    %133 = vmatpush.xpose.msra.mxu0 %v122
    %134 = vmatpush.xpose.msra.mxu0 %v121
    %135 = vmatpush.xpose.msra.mxu0 %v120
    %136 = vmatpush.xpose.msra.mxu0 %v119
    %137 = vmatpush.xpose.msra.mxu0 %v118
    %138 = vmatpush.xpose.msra.mxu0 %v117
    %139 = vmatpush.xpose.msra.mxu0 %v116
    %140 = vmatpush.xpose.msra.mxu0 %v115
    %141 = vmatpush.xpose.msra.mxu0 %v114
    %142 = vmatpush.xpose.msra.mxu0 %v113
    %143 = vmatpush.xpose.msra.mxu0 %v112
    %144 = vmatpush.xpose.msra.mxu0 %v111
    %145 = vmatpush.xpose.msra.mxu0 %v110
    %146 = vmatmul.f32.gmra.mxu0 %v109
    %v147 = vpop.f32.mrf.mxu0
    %v148 = vadd.f32 %v128, %v147
    %149 = vdwg.mxu0
    %v150 = vmax.f32 %v148, 0.0
    %v151 = vld [vmem:[#allocation7] sm:$0xff]
    %v152 = vld [vmem:[#allocation7 + $0x8] sm:$0xff]
    %v153 = vld [vmem:[#allocation7 + $0x10] sm:$0xff]
    %v154 = vld [vmem:[#allocation7 + $0x18] sm:$0xff]
    %v155 = vld [vmem:[#allocation7 + $0x20] sm:$0xff]
    %v156 = vld [vmem:[#allocation7 + $0x28] sm:$0xff]
    %v157 = vld [vmem:[#allocation7 + $0x30] sm:$0xff]
    %v158 = vld [vmem:[#allocation7 + $0x38] sm:$0xff]
    %v159 = vld [vmem:[#allocation7 + $0x40] sm:$0xff]
    %v160 = vld [vmem:[#allocation7 + $0x48] sm:$0xff]
    %v161 = vld [vmem:[#allocation7 + $0x50] sm:$0xff]
    %v162 = vld [vmem:[#allocation7 + $0x58] sm:$0xff]
    %v163 = vld [vmem:[#allocation7 + $0x60] sm:$0xff]
    %v164 = vld [vmem:[#allocation7 + $0x68] sm:$0xff]
    %v165 = vld [vmem:[#allocation7 + $0x70] sm:$0xff]
    %v166 = vld [vmem:[#allocation7 + $0x78] sm:$0xff]
    %v167 = vld [vmem:[%s4] sm:$0x1]
    %v169 = vperm.slane %v167, 0
    %171 = vmatpush.xpose.msra.mxu0 %v166
    %172 = vmatpush.xpose.msra.mxu0 %v165
    %173 = vmatpush.xpose.msra.mxu0 %v164
    %174 = vmatpush.xpose.msra.mxu0 %v163
    %175 = vmatpush.xpose.msra.mxu0 %v162
    %176 = vmatpush.xpose.msra.mxu0 %v161
    %177 = vmatpush.xpose.msra.mxu0 %v160
    %178 = vmatpush.xpose.msra.mxu0 %v159
    %179 = vmatpush.xpose.msra.mxu0 %v158
    %180 = vmatpush.xpose.msra.mxu0 %v157
    %181 = vmatpush.xpose.msra.mxu0 %v156
    %182 = vmatpush.xpose.msra.mxu0 %v155
    %183 = vmatpush.xpose.msra.mxu0 %v154
    %184 = vmatpush.xpose.msra.mxu0 %v153
    %185 = vmatpush.xpose.msra.mxu0 %v152
    %186 = vmatpush.xpose.msra.mxu0 %v151
    %187 = vmatmul.f32.gmra.mxu0 %v150
    %v188 = vpop.f32.mrf.mxu0
    %v189 = vadd.f32 %v169, %v188
    %190 = vdwg.mxu0
    %v191 = vld [vmem:[#allocation8] sm:$0xff]
    %v192 = vld [vmem:[#allocation8 + $0x8] sm:$0xff]
    %v193 = vld [vmem:[#allocation8 + $0x10] sm:$0xff]
    %v194 = vld [vmem:[#allocation8 + $0x18] sm:$0xff]
    %v195 = vld [vmem:[#allocation8 + $0x20] sm:$0xff]
    %v196 = vld [vmem:[#allocation8 + $0x28] sm:$0xff]
    %v197 = vld [vmem:[#allocation8 + $0x30] sm:$0xff]
    %v198 = vld [vmem:[#allocation8 + $0x38] sm:$0xff]
    %v199 = vld [vmem:[#allocation8 + $0x40] sm:$0xff]
    %v200 = vld [vmem:[#allocation8 + $0x48] sm:$0xff]
    %v201 = vld [vmem:[#allocation8 + $0x50] sm:$0xff]
    %v202 = vld [vmem:[#allocation8 + $0x58] sm:$0xff]
    %v203 = vld [vmem:[#allocation8 + $0x60] sm:$0xff]
    %v204 = vld [vmem:[#allocation8 + $0x68] sm:$0xff]
    %v205 = vld [vmem:[#allocation8 + $0x70] sm:$0xff]
    %v206 = vld [vmem:[#allocation8 + $0x78] sm:$0xff]
    %v207 = vld [vmem:[%s6] sm:$0x1]
    %v209 = vperm.slane %v207, 0
    %211 = vmatpush.xpose.msra.mxu0 %v206
    %212 = vmatpush.xpose.msra.mxu0 %v205
    %213 = vmatpush.xpose.msra.mxu0 %v204
    %214 = vmatpush.xpose.msra.mxu0 %v203
    %215 = vmatpush.xpose.msra.mxu0 %v202
    %216 = vmatpush.xpose.msra.mxu0 %v201
    %217 = vmatpush.xpose.msra.mxu0 %v200
    %218 = vmatpush.xpose.msra.mxu0 %v199
    %219 = vmatpush.xpose.msra.mxu0 %v198
    %220 = vmatpush.xpose.msra.mxu0 %v197
    %221 = vmatpush.xpose.msra.mxu0 %v196
    %222 = vmatpush.xpose.msra.mxu0 %v195
    %223 = vmatpush.xpose.msra.mxu0 %v194
    %224 = vmatpush.xpose.msra.mxu0 %v193
    %225 = vmatpush.xpose.msra.mxu0 %v192
    %226 = vmatpush.xpose.msra.mxu0 %v191
    %227 = vmatmul.f32.gmra.mxu0 %v189
    %v228 = vpop.f32.mrf.mxu0
    %v229 = vadd.f32 %v209, %v228
    %230 = vdwg.mxu0
    %v231 = vld [vmem:[#allocation10] sm:$0xff]
    %v232 = vld [vmem:[#allocation10 + $0x8] sm:$0xff]
    %v233 = vld [vmem:[#allocation10 + $0x10] sm:$0xff]
    %v234 = vld [vmem:[#allocation10 + $0x18] sm:$0xff]
    %v235 = vld [vmem:[#allocation10 + $0x20] sm:$0xff]
    %v236 = vld [vmem:[#allocation10 + $0x28] sm:$0xff]
    %v237 = vld [vmem:[#allocation10 + $0x30] sm:$0xff]
    %v238 = vld [vmem:[#allocation10 + $0x38] sm:$0xff]
    %v239 = vld [vmem:[#allocation10 + $0x40] sm:$0xff]
    %v240 = vld [vmem:[#allocation10 + $0x48] sm:$0xff]
    %v241 = vld [vmem:[#allocation10 + $0x50] sm:$0xff]
    %v242 = vld [vmem:[#allocation10 + $0x58] sm:$0xff]
    %v243 = vld [vmem:[#allocation10 + $0x60] sm:$0xff]
    %v244 = vld [vmem:[#allocation10 + $0x68] sm:$0xff]
    %v245 = vld [vmem:[#allocation10 + $0x70] sm:$0xff]
    %v246 = vld [vmem:[#allocation10 + $0x78] sm:$0xff]
    %v247 = vld [vmem:[%s8] sm:$0x1]
    %v249 = vperm.slane %v247, 0
    %251 = vmatpush.xpose.msra.mxu0 %v246
    %252 = vmatpush.xpose.msra.mxu0 %v245
    %253 = vmatpush.xpose.msra.mxu0 %v244
    %254 = vmatpush.xpose.msra.mxu0 %v243
    %255 = vmatpush.xpose.msra.mxu0 %v242
    %256 = vmatpush.xpose.msra.mxu0 %v241
    %257 = vmatpush.xpose.msra.mxu0 %v240
    %258 = vmatpush.xpose.msra.mxu0 %v239
    %259 = vmatpush.xpose.msra.mxu0 %v238
    %260 = vmatpush.xpose.msra.mxu0 %v237
    %261 = vmatpush.xpose.msra.mxu0 %v236
    %262 = vmatpush.xpose.msra.mxu0 %v235
    %263 = vmatpush.xpose.msra.mxu0 %v234
    %264 = vmatpush.xpose.msra.mxu0 %v233
    %265 = vmatpush.xpose.msra.mxu0 %v232
    %266 = vmatpush.xpose.msra.mxu0 %v231
    %267 = vmatmul.f32.gmra.mxu0 %v229
    %v268 = vpop.f32.mrf.mxu0
    %v269 = vadd.f32 %v249, %v268
    %270 = vdwg.mxu0
    %271 = vst [vmem:[#allocation11] sm:$0xff] %v269
    // Predicated region
    $region58: #{tpu_custom_call.1} parent=1 // pred_check
      _
    $region59: #{tpu_custom_call.1} parent=1 // pred_check_branch
      %273 = sbr.rel (0) target = $region61
    $region60: #{tpu_custom_call.1} parent=1 // pred_region
      %275 = vsyncadd [#allocation4], 0
      %s277 = sshll.u32 [#allocation11], 4
      %s278 = int_to_ptr.vmem [resolvable:$true] %s277
      %s279 = sshll.u32 %s9, 4
      %s280 = int_to_ptr.hbm [resolvable:$true] %s279
      %282 = dma.vmem_to_hbm [thread:$0]  %s278, 128, %s280, [#allocation4]
    $region61: #{tpu_custom_call.1} parent=1 // pred_fallthru
      _
    // Predicated region
    $region62: #{tpu_custom_call.1} parent=1 // pred_check
      _
    $region63: #{tpu_custom_call.1} parent=1 // pred_check_branch
      %284 = sbr.rel (0) target = $region65
    $region64: #{tpu_custom_call.1} parent=1 // pred_region
      %286 = dma.done [#allocation4], 128
    $region65: #{tpu_custom_call.1} parent=1 // pred_fallthru
      _
    %287 = vsyncpa [#allocation3], 1
    %288 = vsyncpa [#allocation6], 1
    %289 = vsyncpa [#allocation9], 1
    %290 = vsyncpa [#allocation4], 1

</llo_original>
